<compile_context>
chip_gen: v7x
topology: tpu7x:2x2x1
jax: 0.10.0
libtpu: 0.0.40
codegen_flags: <defaults>
</compile_context>

<pallas_src>
import jax
import jax.numpy as jnp
from jax.experimental import pallas as pl
from jax.experimental.pallas import tpu as pltpu

# ---- small, module-consistent shapes -------------------------------------
C_IN, H, W = 4, 16, 16           # input x: (B, C_IN, H, W), NCHW like PyTorch
F_OUT = 8                        # conv output channels
N_CLS = 10                       # classifier classes
N_CLS_PAD = 128                  # lane-dense accumulator/output width (sliced in glue)
KSIZE = 3                        # 3x3 conv, padding=1 (same)
P = H * W                        # 256 spatial positions (lane-minor)
THRESHOLD = 0.5                  # IF neuron firing threshold (compile-time const)
INV_THRESHOLD = 1.0 / THRESHOLD
N_STEPS = 4                      # = time_step T (wrapper caps its while-loop at 16)
B_TILE_MAX = 32                  # samples per grid step (statically unrolled serial loop)


# ---- Pallas kernel: the inherently serial SNN recurrence -------------------
def _snn_serial_kernel(y_ref, convb_ref, fcw_ref, fcb_ref, out_ref,
                       v_ref, ylast_ref, accu_ref):
    """Sequential IF-membrane / accumulator loop over one tile of samples.

    y_ref:    (B_TILE, F_OUT, P)   conv(x) per sample (no bias, no delta)
    out_ref:  (B_TILE, N_CLS_PAD)  running-accumulator snapshot per sample
    Scratch (persists across grid steps): v_ref (membrane), ylast_ref
    (= conv(last_input)), accu_ref (running classifier accumulator).
    """
    b_tile = y_ref.shape[0]

    # One-time init at the first grid step.  The LLConv2d / LLLinear biases are
    # injected only at the very first global time step, so they are folded into
    # the membrane / accumulator init instead of per-sample masked adds (review #5).
    @pl.when(pl.program_id(0) == 0)
    def _init():
        v_ref[...] = jnp.zeros((F_OUT, P), jnp.float32) + convb_ref[...]
        ylast_ref[...] = jnp.zeros_like(ylast_ref)     # last_input starts at 0.0
        accu_ref[...] = fcb_ref[...]

    fcw = fcw_ref[...]                                  # (F_OUT, N_CLS_PAD), hoisted
    v = v_ref[...]                                      # state stays in vregs
    ylast = ylast_ref[...]
    accu = accu_ref[...]

    # Serial part that cannot be batch-parallelized: membrane / accu / last_input
    # carry across samples.  Static unroll keeps all indexing static.
    for s in range(b_tile):
        y_s = y_ref[s]                                  # (F_OUT, P)
        # LCC delta, in conv space: conv(x_s - last) == conv(x_s) - conv(last).
        v0 = v + (y_s - ylast)
        ylast = y_s
        # Closed-form T-step IF neuron (zero drive for t>0, soft reset):
        # spikes over T steps are all of one sign, count = min(floor(|v0|/th), T).
        n = jnp.minimum(jnp.floor(jnp.abs(v0) * INV_THRESHOLD), float(N_STEPS))
        spike_sum = jnp.where(v0 >= 0.0, THRESHOLD, -THRESHOLD) * n
        v = v0 - spike_sum
        # Global average pool + classifier head, folded over the T steps:
        #   sum_t (mean_p spike_t) @ W == (mean_p sum_t spike_t) @ W
        pooled = jnp.sum(spike_sum, axis=1, keepdims=True) * (1.0 / P)  # (F_OUT, 1)
        accu = accu + jnp.sum(pooled * fcw, axis=0, keepdims=True)      # (1, N_CLS_PAD)
        out_ref[s, :] = accu[0, :]                      # row of the output slab

    v_ref[...] = v
    ylast_ref[...] = ylast
    accu_ref[...] = accu


# ---- JAX glue -------------------------------------------------------------
def snn_wrapper_lcc_forward(x, params):
    """SNNWrapperLCC.forward for the simplified conv -> IF -> pool -> fc model.

    The batch-parallel conv is issued once for the whole batch by XLA (on v7x it
    can use both TensorCores; on v5e it is one wide matmul-style op), while the
    inherently serial SNN recurrence runs in a single Pallas kernel over batch
    tiles with all state resident in VMEM.
    """
    conv_w, conv_b, fc_w_pad, fc_b_pad = params
    B = x.shape[0]

    # conv(x) for the whole batch, no bias, no delta: (B, F_OUT, P).
    y = jax.lax.conv_general_dilated(
        x, conv_w, window_strides=(1, 1), padding="SAME",
        dimension_numbers=("NCHW", "OIHW", "NCHW"))
    y = y.reshape(B, F_OUT, P)

    # Tile the batch.  Padded samples' outputs are discarded, and state does not
    # persist across calls, so the extra trailing steps are harmless.
    bt = min(B, B_TILE_MAX)
    n_tiles = -(-B // bt)
    b_pad = n_tiles * bt
    if b_pad != B:
        y = jnp.concatenate(
            [y, jnp.zeros((b_pad - B, F_OUT, P), y.dtype)], axis=0)

    out = pl.pallas_call(
        _snn_serial_kernel,
        out_shape=jax.ShapeDtypeStruct((b_pad, N_CLS_PAD), jnp.float32),
        grid_spec=pltpu.PrefetchScalarGridSpec(
            num_scalar_prefetch=0,
            grid=(n_tiles,),
            in_specs=[
                pl.BlockSpec((bt, F_OUT, P), lambda i: (i, 0, 0)),    # per-tile conv outputs
                pl.BlockSpec((F_OUT, 1), lambda i: (0, 0)),           # conv bias (resident)
                pl.BlockSpec((F_OUT, N_CLS_PAD), lambda i: (0, 0)),   # fc weight (resident)
                pl.BlockSpec((1, N_CLS_PAD), lambda i: (0, 0)),       # fc bias (resident)
            ],
            out_specs=pl.BlockSpec((bt, N_CLS_PAD), lambda i: (i, 0)),  # lane-dense slab
            scratch_shapes=[
                pltpu.VMEM((F_OUT, P), jnp.float32),       # IF membrane state
                pltpu.VMEM((F_OUT, P), jnp.float32),       # conv(last_input) carry
                pltpu.VMEM((1, N_CLS_PAD), jnp.float32),   # running accumulator
            ]),
        compiler_params=pltpu.CompilerParams(
            # The sample axis carries state (membrane / accu / last_input) and
            # must stay sequential.
            dimension_semantics=("arbitrary",)),
    )(y, conv_b, fc_w_pad, fc_b_pad)
    return out[:B, :N_CLS]                              # (B, N_CLS)


# ---- pure-JAX reference (same simplified semantics, per-step structure) ----
def _reference_forward(x, conv_w_t, conv_b_t, fc_w_t, fc_b_t):
    B = x.shape[0]
    v = jnp.zeros((F_OUT, H, W), jnp.float32)
    accu = jnp.zeros((N_CLS,), jnp.float32)
    last = jnp.zeros((C_IN, H, W), jnp.float32)
    gstep = 0
    outs = []
    for b in range(B):
        for t in range(N_STEPS):
            inp = (x[b] - last) if t == 0 else jnp.zeros((C_IN, H, W), jnp.float32)
            bias_on = 1.0 if gstep == 0 else 0.0
            z = jax.lax.conv_general_dilated(
                inp[None], conv_w_t, window_strides=(1, 1), padding="SAME",
                dimension_numbers=("NCHW", "OIHW", "NCHW"))[0]
            z = z + bias_on * conv_b_t[:, None, None]
            v = v + z
            spike = THRESHOLD * ((v >= THRESHOLD).astype(jnp.float32)
                                 - (v <= -THRESHOLD).astype(jnp.float32))
            v = v - spike
            pooled = jnp.mean(spike, axis=(1, 2))
            accu = accu + pooled @ fc_w_t.T + bias_on * fc_b_t
            gstep += 1
        outs.append(accu)
        last = x[b]
    return jnp.stack(outs, axis=0)


# ---- deterministic parameter init + run -----------------------------------
if __name__ == "__main__":
    key = jax.random.PRNGKey(0)
    kx, kw1, kb1, kw2, kb2 = jax.random.split(key, 5)

    x = jax.random.normal(kx, (2, C_IN, H, W), dtype=jnp.float32)

    # PyTorch-shaped params, re-laid-out (lane-padded) where the kernel needs it.
    conv_w_t = jax.random.normal(kw1, (F_OUT, C_IN, KSIZE, KSIZE), jnp.float32) * 0.1
    conv_b_t = jax.random.normal(kb1, (F_OUT,), jnp.float32) * 0.1
    fc_w_t = jax.random.normal(kw2, (N_CLS, F_OUT), jnp.float32) * 0.1
    fc_b_t = jax.random.normal(kb2, (N_CLS,), jnp.float32) * 0.1

    params = (
        conv_w_t,                                       # (F_OUT, C_IN, 3, 3) OIHW
        conv_b_t.reshape(F_OUT, 1),                     # (F_OUT, 1)
        jnp.zeros((F_OUT, N_CLS_PAD), jnp.float32).at[:, :N_CLS].set(fc_w_t.T),
        jnp.zeros((1, N_CLS_PAD), jnp.float32).at[:, :N_CLS].set(fc_b_t[None, :]),
    )

    forward = jax.jit(snn_wrapper_lcc_forward)
    out = jax.block_until_ready(forward(x, params))
    assert out.shape == (2, N_CLS), out.shape
    assert bool(jnp.all(jnp.isfinite(out)))

    ref = jax.block_until_ready(
        _reference_forward(x, conv_w_t, conv_b_t, fc_w_t, fc_b_t))
    # Loose tolerance: a membrane value within float-eps of a threshold multiple
    # can flip one spike between the closed-form and step-by-step evaluations.
    assert jnp.allclose(out, ref, rtol=1e-3, atol=5e-3), (out, ref)

    print("KERNEL_OK")
</pallas_src>

<mosaic_0001>
module attributes {stable_mosaic.version = 11 : i64} {
  func.func @_snn_serial_kernel(%arg0: i32, %arg1: memref<2x8x256xf32, #tpu.memory_space<vmem>>, %arg2: memref<8x1xf32, #tpu.memory_space<vmem>>, %arg3: memref<8x128xf32, #tpu.memory_space<vmem>>, %arg4: memref<1x128xf32, #tpu.memory_space<vmem>>, %arg5: memref<2x128xf32, #tpu.memory_space<vmem>>, %arg6: memref<8x256xf32, #tpu.memory_space<vmem>>, %arg7: memref<8x256xf32, #tpu.memory_space<vmem>>, %arg8: memref<1x128xf32, #tpu.memory_space<vmem>>) attributes {dimension_semantics = [#tpu.dimension_semantics<arbitrary>], iteration_bounds = array<i64: 1>, scalar_prefetch = 0 : i64, scratch_operands = 3 : i64, tpu.core_type = #tpu.core_type<tc>, window_params = [{transform_indices = @transform_0, window_bounds = array<i64: 2, 8, 256>}, {pipeline_mode = #tpu.pipeline_mode<synchronous>, transform_indices = @transform_1, window_bounds = array<i64: 8, 1>}, {pipeline_mode = #tpu.pipeline_mode<synchronous>, transform_indices = @transform_2, window_bounds = array<i64: 8, 128>}, {pipeline_mode = #tpu.pipeline_mode<synchronous>, transform_indices = @transform_3, window_bounds = array<i64: 1, 128>}, {transform_indices = @transform_4, window_bounds = array<i64: 2, 128>}]} {
    %c0_i32 = arith.constant 0 : i32
    %0 = arith.cmpi eq, %arg0, %c0_i32 : i32
    %1 = arith.extui %0 : i1 to i32
    %c0_i32_0 = arith.constant 0 : i32
    %2 = arith.cmpi ne, %1, %c0_i32_0 : i32
    scf.if %2 {
      %cst_38 = arith.constant 0.000000e+00 : f32
      %70 = vector.broadcast %cst_38 : f32 to vector<8x256xf32>
      %c0_39 = arith.constant 0 : index
      %c0_40 = arith.constant 0 : index
      %71 = vector.load %arg2[%c0_39, %c0_40] : memref<8x1xf32, #tpu.memory_space<vmem>>, vector<8x1xf32>
      %72 = vector.broadcast %71 : vector<8x1xf32> to vector<8x256xf32>
      %73 = arith.addf %70, %72 : vector<8x256xf32>
      %c0_41 = arith.constant 0 : index
      %c0_42 = arith.constant 0 : index
      %74 = vector.load %arg6[%c0_41, %c0_42] : memref<8x256xf32, #tpu.memory_space<vmem>>, vector<8x256xf32>
      tpu.vector_store %arg6[%c0_41, %c0_42], %73 {strides = array<i32>} : memref<8x256xf32, #tpu.memory_space<vmem>>, vector<8x256xf32>,
      %cst_43 = arith.constant 0.000000e+00 : f32
      %75 = vector.broadcast %cst_43 : f32 to vector<8x256xf32>
      %c0_44 = arith.constant 0 : index
      %c0_45 = arith.constant 0 : index
      %76 = vector.load %arg7[%c0_44, %c0_45] : memref<8x256xf32, #tpu.memory_space<vmem>>, vector<8x256xf32>
      tpu.vector_store %arg7[%c0_44, %c0_45], %75 {strides = array<i32>} : memref<8x256xf32, #tpu.memory_space<vmem>>, vector<8x256xf32>,
      %c0_46 = arith.constant 0 : index
      %c0_47 = arith.constant 0 : index
      %77 = vector.load %arg4[%c0_46, %c0_47] : memref<1x128xf32, #tpu.memory_space<vmem>>, vector<1x128xf32>
      %c0_48 = arith.constant 0 : index
      %c0_49 = arith.constant 0 : index
      %78 = vector.load %arg8[%c0_48, %c0_49] : memref<1x128xf32, #tpu.memory_space<vmem>>, vector<1x128xf32>
      tpu.vector_store %arg8[%c0_48, %c0_49], %77 {strides = array<i32>} : memref<1x128xf32, #tpu.memory_space<vmem>>, vector<1x128xf32>,
    } else {
    }
    %c0 = arith.constant 0 : index
    %c0_1 = arith.constant 0 : index
    %3 = vector.load %arg3[%c0, %c0_1] : memref<8x128xf32, #tpu.memory_space<vmem>>, vector<8x128xf32>
    %c0_2 = arith.constant 0 : index
    %c0_3 = arith.constant 0 : index
    %4 = vector.load %arg6[%c0_2, %c0_3] : memref<8x256xf32, #tpu.memory_space<vmem>>, vector<8x256xf32>
    %c0_4 = arith.constant 0 : index
    %c0_5 = arith.constant 0 : index
    %5 = vector.load %arg7[%c0_4, %c0_5] : memref<8x256xf32, #tpu.memory_space<vmem>>, vector<8x256xf32>
    %c0_6 = arith.constant 0 : index
    %c0_7 = arith.constant 0 : index
    %6 = vector.load %arg8[%c0_6, %c0_7] : memref<1x128xf32, #tpu.memory_space<vmem>>, vector<1x128xf32>
    %c0_8 = arith.constant 0 : index
    %c0_9 = arith.constant 0 : index
    %c0_10 = arith.constant 0 : index
    %7 = vector.load %arg1[%c0_8, %c0_9, %c0_10] : memref<2x8x256xf32, #tpu.memory_space<vmem>>, vector<1x8x256xf32>
    %8 = vector.shape_cast %7 : vector<1x8x256xf32> to vector<8x256xf32>
    %9 = arith.subf %8, %5 : vector<8x256xf32>
    %10 = arith.addf %4, %9 : vector<8x256xf32>
    %11 = math.absf %10 : vector<8x256xf32>
    %cst = arith.constant 2.000000e+00 : f32
    %12 = vector.broadcast %cst : f32 to vector<8x256xf32>
    %13 = arith.mulf %11, %12 : vector<8x256xf32>
    %14 = math.floor %13 : vector<8x256xf32>
    %cst_11 = arith.constant 4.000000e+00 : f32
    %15 = vector.broadcast %cst_11 : f32 to vector<8x256xf32>
    %16 = arith.minimumf %14, %15 : vector<8x256xf32>
    %cst_12 = arith.constant 0.000000e+00 : f32
    %17 = vector.broadcast %cst_12 : f32 to vector<8x256xf32>
    %18 = arith.cmpf oge, %10, %17 : vector<8x256xf32>
    %cst_13 = arith.constant 5.000000e-01 : f32
    %cst_14 = arith.constant -5.000000e-01 : f32
    %19 = vector.broadcast %cst_13 : f32 to vector<8x256xf32>
    %20 = vector.broadcast %cst_14 : f32 to vector<8x256xf32>
    %21 = arith.select %18, %19, %20 : vector<8x256xi1>, vector<8x256xf32>
    %22 = arith.mulf %21, %16 : vector<8x256xf32>
    %23 = arith.subf %10, %22 : vector<8x256xf32>
    %cst_15 = arith.constant dense<0.000000e+00> : vector<8xf32>
    %24 = vector.multi_reduction <add>, %22, %cst_15 [1] : vector<8x256xf32> to vector<8xf32>
    %25 = vector.shape_cast %24 : vector<8xf32> to vector<8x1xf32>
    %cst_16 = arith.constant 3.906250e-03 : f32
    %26 = vector.broadcast %cst_16 : f32 to vector<8x1xf32>
    %27 = arith.mulf %25, %26 : vector<8x1xf32>
    %28 = vector.broadcast %27 : vector<8x1xf32> to vector<8x128xf32>
    %29 = arith.mulf %28, %3 : vector<8x128xf32>
    %cst_17 = arith.constant dense<0.000000e+00> : vector<128xf32>
    %30 = vector.multi_reduction <add>, %29, %cst_17 [0] : vector<8x128xf32> to vector<128xf32>
    %31 = vector.shape_cast %30 : vector<128xf32> to vector<1x128xf32>
    %32 = arith.addf %6, %31 : vector<1x128xf32>
    %33 = vector.shape_cast %32 : vector<1x128xf32> to vector<128xf32>
    %c0_18 = arith.constant 0 : index
    %c0_19 = arith.constant 0 : index
    %34 = vector.load %arg5[%c0_18, %c0_19] : memref<2x128xf32, #tpu.memory_space<vmem>>, vector<1x128xf32>
    %35 = vector.shape_cast %34 : vector<1x128xf32> to vector<128xf32>
    %36 = vector.shape_cast %33 : vector<128xf32> to vector<1x128xf32>
    tpu.vector_store %arg5[%c0_18, %c0_19], %36 {strides = array<i32>} : memref<2x128xf32, #tpu.memory_space<vmem>>, vector<1x128xf32>,
    %c1 = arith.constant 1 : index
    %c0_20 = arith.constant 0 : index
    %c0_21 = arith.constant 0 : index
    %37 = vector.load %arg1[%c1, %c0_20, %c0_21] : memref<2x8x256xf32, #tpu.memory_space<vmem>>, vector<1x8x256xf32>
    %38 = vector.shape_cast %37 : vector<1x8x256xf32> to vector<8x256xf32>
    %39 = arith.subf %38, %8 : vector<8x256xf32>
    %40 = arith.addf %23, %39 : vector<8x256xf32>
    %41 = math.absf %40 : vector<8x256xf32>
    %cst_22 = arith.constant 2.000000e+00 : f32
    %42 = vector.broadcast %cst_22 : f32 to vector<8x256xf32>
    %43 = arith.mulf %41, %42 : vector<8x256xf32>
    %44 = math.floor %43 : vector<8x256xf32>
    %cst_23 = arith.constant 4.000000e+00 : f32
    %45 = vector.broadcast %cst_23 : f32 to vector<8x256xf32>
    %46 = arith.minimumf %44, %45 : vector<8x256xf32>
    %cst_24 = arith.constant 0.000000e+00 : f32
    %47 = vector.broadcast %cst_24 : f32 to vector<8x256xf32>
    %48 = arith.cmpf oge, %40, %47 : vector<8x256xf32>
    %cst_25 = arith.constant 5.000000e-01 : f32
    %cst_26 = arith.constant -5.000000e-01 : f32
    %49 = vector.broadcast %cst_25 : f32 to vector<8x256xf32>
    %50 = vector.broadcast %cst_26 : f32 to vector<8x256xf32>
    %51 = arith.select %48, %49, %50 : vector<8x256xi1>, vector<8x256xf32>
    %52 = arith.mulf %51, %46 : vector<8x256xf32>
    %53 = arith.subf %40, %52 : vector<8x256xf32>
    %cst_27 = arith.constant dense<0.000000e+00> : vector<8xf32>
    %54 = vector.multi_reduction <add>, %52, %cst_27 [1] : vector<8x256xf32> to vector<8xf32>
    %55 = vector.shape_cast %54 : vector<8xf32> to vector<8x1xf32>
    %cst_28 = arith.constant 3.906250e-03 : f32
    %56 = vector.broadcast %cst_28 : f32 to vector<8x1xf32>
    %57 = arith.mulf %55, %56 : vector<8x1xf32>
    %58 = vector.broadcast %57 : vector<8x1xf32> to vector<8x128xf32>
    %59 = arith.mulf %58, %3 : vector<8x128xf32>
    %cst_29 = arith.constant dense<0.000000e+00> : vector<128xf32>
    %60 = vector.multi_reduction <add>, %59, %cst_29 [0] : vector<8x128xf32> to vector<128xf32>
    %61 = vector.shape_cast %60 : vector<128xf32> to vector<1x128xf32>
    %62 = arith.addf %32, %61 : vector<1x128xf32>
    %63 = vector.shape_cast %62 : vector<1x128xf32> to vector<128xf32>
    %c1_30 = arith.constant 1 : index
    %c0_31 = arith.constant 0 : index
    %64 = vector.load %arg5[%c1_30, %c0_31] : memref<2x128xf32, #tpu.memory_space<vmem>>, vector<1x128xf32>
    %65 = vector.shape_cast %64 : vector<1x128xf32> to vector<128xf32>
    %66 = vector.shape_cast %63 : vector<128xf32> to vector<1x128xf32>
    tpu.vector_store %arg5[%c1_30, %c0_31], %66 {strides = array<i32>} : memref<2x128xf32, #tpu.memory_space<vmem>>, vector<1x128xf32>,
    %c0_32 = arith.constant 0 : index
    %c0_33 = arith.constant 0 : index
    %67 = vector.load %arg6[%c0_32, %c0_33] : memref<8x256xf32, #tpu.memory_space<vmem>>, vector<8x256xf32>
    tpu.vector_store %arg6[%c0_32, %c0_33], %53 {strides = array<i32>} : memref<8x256xf32, #tpu.memory_space<vmem>>, vector<8x256xf32>,
    %c0_34 = arith.constant 0 : index
    %c0_35 = arith.constant 0 : index
    %68 = vector.load %arg7[%c0_34, %c0_35] : memref<8x256xf32, #tpu.memory_space<vmem>>, vector<8x256xf32>
    tpu.vector_store %arg7[%c0_34, %c0_35], %38 {strides = array<i32>} : memref<8x256xf32, #tpu.memory_space<vmem>>, vector<8x256xf32>,
    %c0_36 = arith.constant 0 : index
    %c0_37 = arith.constant 0 : index
    %69 = vector.load %arg8[%c0_36, %c0_37] : memref<1x128xf32, #tpu.memory_space<vmem>>, vector<1x128xf32>
    tpu.vector_store %arg8[%c0_36, %c0_37], %62 {strides = array<i32>} : memref<1x128xf32, #tpu.memory_space<vmem>>, vector<1x128xf32>,
    return
  }
  func.func @transform_0(%arg0: i32) -> (i32, i32, i32) {
    %c0_i32 = arith.constant 0 : i32
    %c0_i32_0 = arith.constant 0 : i32
    %c0_i32_1 = arith.constant 0 : i32
    return %arg0, %c0_i32, %c0_i32_0 : i32, i32, i32
  }
  func.func @transform_1(%arg0: i32) -> (i32, i32) {
    %c0_i32 = arith.constant 0 : i32
    %c0_i32_0 = arith.constant 0 : i32
    %c0_i32_1 = arith.constant 0 : i32
    return %c0_i32, %c0_i32_0 : i32, i32
  }
  func.func @transform_2(%arg0: i32) -> (i32, i32) {
    %c0_i32 = arith.constant 0 : i32
    %c0_i32_0 = arith.constant 0 : i32
    %c0_i32_1 = arith.constant 0 : i32
    return %c0_i32, %c0_i32_0 : i32, i32
  }
  func.func @transform_3(%arg0: i32) -> (i32, i32) {
    %c0_i32 = arith.constant 0 : i32
    %c0_i32_0 = arith.constant 0 : i32
    %c0_i32_1 = arith.constant 0 : i32
    return %c0_i32, %c0_i32_0 : i32, i32
  }
  func.func @transform_4(%arg0: i32) -> (i32, i32) {
    %c0_i32 = arith.constant 0 : i32
    %c0_i32_0 = arith.constant 0 : i32
    return %arg0, %c0_i32 : i32, i32
  }
}

</mosaic_0001>

<llo_original>
// kernel: snn_wrapper_lcc_forward.1
$region0: #{snn_wrapper_lcc_forward.1}
  #allocation0 [shape = 'u32[]', space=smem, size = 0x4, offset = 0x4, fixed_abs, tag = 'smem constant byte address 0x4 - core index']
  #allocation1 [shape = 'u32[144,128]{1,0:T(1,128)}', space=vmem, size = 0x12000, scoped, tag = 'internal scratch']
  #allocation2 [shape = 'f32[8,256]{1,0:T(8,128)}', space=vmem, size = 0x2000, scoped, tag = 'scratch operand']
  #allocation3 [shape = 'f32[8,256]{1,0:T(8,128)}', space=vmem, size = 0x2000, scoped, tag = 'scratch operand']
  #allocation4 [shape = 'f32[1,128]{1,0:T(1,128)}', space=vmem, size = 0x200, scoped, tag = 'scratch operand']
  %s0 = inlined_call_operand.vmem [shape: f32[2,8,256], index: 0, kind: input, shape index: {}]
  %s1 = inlined_call_operand.vmem [shape: f32[8,1], index: 1, kind: input, shape index: {}]
  %s2 = inlined_call_operand.vmem [shape: f32[8,128], index: 2, kind: input, shape index: {}]
  %s3 = inlined_call_operand.vmem [shape: f32[1,128], index: 3, kind: input, shape index: {}]
  %s4 = inlined_call_operand.hbm [shape: f32[2,128], index: 4, kind: output, shape index: {}]
  %s5 = sld [smem:[#allocation0]]
  $region30: #{snn_wrapper_lcc_forward.1} parent=0
    _
  %s7 = ssub.s32 1, %s5
  %s8 = scalar_select 0, %s7, %s5
  $region1: #{snn_wrapper_lcc_forward.1} parent=0
    #allocation5 [shape = 'u8[1024]{0}', space=vmem, size = 0x400, scoped, tag = 'output window, operand 0, single buffered']
    #allocation6 [shape = 's32[1]{0}', space=sflag, size = 0x4, scoped, tag = 'scoped memory for snn_wrapper_lcc_forward.1']
    %9 = vsyncpa [#allocation6], 0
    // Predicated region
    $region2: #{snn_wrapper_lcc_forward.1} parent=1 // pred_check
      _
    $region3: #{snn_wrapper_lcc_forward.1} parent=1 // pred_check_branch
      %11 = sbr.rel (0) target = $region5
    $region4: #{snn_wrapper_lcc_forward.1} parent=1 // pred_region
      _
    $region5: #{snn_wrapper_lcc_forward.1} parent=1 // pred_fallthru
      _
    // Predicated region
    $region6: #{snn_wrapper_lcc_forward.1} parent=1 // pred_check
      _
    $region7: #{snn_wrapper_lcc_forward.1} parent=1 // pred_check_branch
      %13 = sbr.rel (0) target = $region9
    $region8: #{snn_wrapper_lcc_forward.1} parent=1 // pred_region
      _
    $region9: #{snn_wrapper_lcc_forward.1} parent=1 // pred_fallthru
      _
    // Predicated region
    $region10: #{snn_wrapper_lcc_forward.1} parent=1 // pred_check
      _
    $region11: #{snn_wrapper_lcc_forward.1} parent=1 // pred_check_branch
      %15 = sbr.rel (0) target = $region13
    $region12: #{snn_wrapper_lcc_forward.1} parent=1 // pred_region
      _
    $region13: #{snn_wrapper_lcc_forward.1} parent=1 // pred_fallthru
      _
    // Predicated region
    $region14: #{snn_wrapper_lcc_forward.1} parent=1 // pred_check
      _
    $region15: #{snn_wrapper_lcc_forward.1} parent=1 // pred_check_branch
      %17 = sbr.rel (0) target = $region17
    $region16: #{snn_wrapper_lcc_forward.1} parent=1 // pred_region
      _
    $region17: #{snn_wrapper_lcc_forward.1} parent=1 // pred_fallthru
      _
    %p18 = scmp.eq.s32.totalorder 0, 0
    // Predicated region
    $region18: #{snn_wrapper_lcc_forward.1} parent=1 // pred_check
      %p19 = pneg %p18
    $region19: #{snn_wrapper_lcc_forward.1} parent=1 // pred_check_branch
      %21 = sbr.rel (%p19) target = $region21
    $region20: #{snn_wrapper_lcc_forward.1} parent=1 // pred_region
      %v22 = vld [vmem:[%s1] sm:$0xff]
      %24 = vset.pattern.permute.xlu0 0
      %25 = vperm.xlu0 %24, %v22
      %v26 = vpop.permute.xlu0 %25
      %v28 = vadd.f32 %v26, 0.0
      %29 = vst [vmem:[#allocation2] sm:$0xff] %v28
      %30 = vst [vmem:[#allocation2 + $0x8] sm:$0xff] %v28
      %31 = vst [vmem:[#allocation3] sm:$0xff] 0.0
      %32 = vst [vmem:[#allocation3 + $0x8] sm:$0xff] 0.0
      %v33 = vld [vmem:[%s3] sm:$0x1]
      %34 = vst [vmem:[#allocation4] sm:$0x1] %v33
    $region21: #{snn_wrapper_lcc_forward.1} parent=1 // pred_fallthru
      _
    %v35 = vld [vmem:[%s2] sm:$0xff]
    %v36 = vld [vmem:[#allocation2] sm:$0xff]
    %v37 = vld [vmem:[#allocation2 + $0x8] sm:$0xff]
    %v38 = vld [vmem:[#allocation3] sm:$0xff]
    %v39 = vld [vmem:[#allocation3 + $0x8] sm:$0xff]
    %v40 = vld [vmem:[#allocation4] sm:$0x1]
    %v41 = vld [vmem:[%s0] sm:$0xff]
    %v42 = vld [vmem:[%s0 + $0x8] sm:$0xff]
    %v43 = vsub.f32 %v41, %v38
    %v44 = vsub.f32 %v42, %v39
    %v45 = vadd.f32 %v36, %v43
    %v46 = vadd.f32 %v37, %v44
    %v47 = vand.u32 2147483647, %v45
    %v48 = vand.u32 2147483647, %v46
    %v49 = vmul.f32 %v47, 2.0
    %v50 = vmul.f32 %v48, 2.0
    %v51 = vfloor.f32 %v49
    %v52 = vfloor.f32 %v50
    %v53 = vmin.f32 %v51, 4.0
    %v54 = vmin.f32 %v52, 4.0
    %vm55 = vcmp.ge.f32.partialorder %v45, 0.0
    %vm56 = vcmp.ge.f32.partialorder %v46, 0.0
    %v57 = vsel %vm55, 0.5, -0.5
    %v58 = vsel %vm56, 0.5, -0.5
    %v59 = vmul.f32 %v57, %v53
    %v60 = vmul.f32 %v58, %v54
    %v61 = vsub.f32 %v45, %v59
    %v62 = vsub.f32 %v46, %v60
    %v63 = vadd.f32 %v59, %v60
    %64 = vadd.xlane.f32.xlu0 %v63
    %v65 = vpop.xlane.xlu0 %64
    %v66 = vmul.f32 %v65, 0.00390625
    %v67 = vmul.f32 %v66, %v35
    %v68 = vrot.slane %v67, 4
    %v69 = vadd.f32 %v67, %v68
    %v70 = vrot.slane %v69, 2
    %v71 = vadd.f32 %v69, %v70
    %v72 = vrot.slane %v71, 1
    %v73 = vadd.f32 %v71, %v72
    %v74 = vadd.f32 %v40, %v73
    %75 = vst [vmem:[#allocation5] sm:$0x1] %v74
    %s76 = scalar_lea.vmem %s0, 16
    %v77 = vld [vmem:[%s76] sm:$0xff]
    %v78 = vld [vmem:[%s76 + $0x8] sm:$0xff]
    %v79 = vsub.f32 %v77, %v41
    %v80 = vsub.f32 %v78, %v42
    %v81 = vadd.f32 %v61, %v79
    %v82 = vadd.f32 %v62, %v80
    %v83 = vand.u32 2147483647, %v81
    %v84 = vand.u32 2147483647, %v82
    %v85 = vmul.f32 %v83, 2.0
    %v86 = vmul.f32 %v84, 2.0
    %v87 = vfloor.f32 %v85
    %v88 = vfloor.f32 %v86
    %v89 = vmin.f32 %v87, 4.0
    %v90 = vmin.f32 %v88, 4.0
    %vm91 = vcmp.ge.f32.partialorder %v81, 0.0
    %vm92 = vcmp.ge.f32.partialorder %v82, 0.0
    %v93 = vsel %vm91, 0.5, -0.5
    %v94 = vsel %vm92, 0.5, -0.5
    %v95 = vmul.f32 %v93, %v89
    %v96 = vmul.f32 %v94, %v90
    %v97 = vsub.f32 %v81, %v95
    %v98 = vsub.f32 %v82, %v96
    %v99 = vadd.f32 %v95, %v96
    %100 = vadd.xlane.f32.xlu0 %v99
    %v101 = vpop.xlane.xlu0 %100
    %v102 = vmul.f32 %v101, 0.00390625
    %v103 = vmul.f32 %v102, %v35
    %v104 = vrot.slane %v103, 4
    %v105 = vadd.f32 %v103, %v104
    %v106 = vrot.slane %v105, 2
    %v107 = vadd.f32 %v105, %v106
    %v108 = vrot.slane %v107, 1
    %v109 = vadd.f32 %v107, %v108
    %v110 = vadd.f32 %v74, %v109
    %111 = vst [vmem:[#allocation5 + $0x1] sm:$0x1] %v110
    %112 = vst [vmem:[#allocation2] sm:$0xff] %v97
    %113 = vst [vmem:[#allocation2 + $0x8] sm:$0xff] %v98
    %114 = vst [vmem:[#allocation3] sm:$0xff] %v77
    %115 = vst [vmem:[#allocation3 + $0x8] sm:$0xff] %v78
    %116 = vst [vmem:[#allocation4] sm:$0x1] %v110
    // Predicated region
    $region22: #{snn_wrapper_lcc_forward.1} parent=1 // pred_check
      _
    $region23: #{snn_wrapper_lcc_forward.1} parent=1 // pred_check_branch
      %118 = sbr.rel (0) target = $region25
    $region24: #{snn_wrapper_lcc_forward.1} parent=1 // pred_region
      %s120 = ssub.s32 32, 32
      %121 = vsyncadd [#allocation6], %s120
      %s123 = sshll.u32 [#allocation5], 4
      %s124 = int_to_ptr.vmem [resolvable:$true] %s123
      %126 = dma.vmem_to_hbm [thread:$0]  %s124, 32, %s4, [#allocation6]
    $region25: #{snn_wrapper_lcc_forward.1} parent=1 // pred_fallthru
      _
    // Predicated region
    $region26: #{snn_wrapper_lcc_forward.1} parent=1 // pred_check
      _
    $region27: #{snn_wrapper_lcc_forward.1} parent=1 // pred_check_branch
      %128 = sbr.rel (0) target = $region29
    $region28: #{snn_wrapper_lcc_forward.1} parent=1 // pred_region
      %129 = dma.done [#allocation6], 32
    $region29: #{snn_wrapper_lcc_forward.1} parent=1 // pred_fallthru
      _
    %130 = vsyncpa [#allocation6], 1

</llo_original>
